<compile_context>
chip_gen: v7x
topology: tpu7x:2x2x1
jax: 0.10.0
libtpu: 0.0.40
codegen_flags: <defaults>
</compile_context>

<pallas_src>
import math

import jax
import jax.numpy as jnp
from jax.experimental import pallas as pl
from jax.experimental.pallas import tpu as pltpu


_VMEM_LIMIT_BYTES = 40 * 1024 * 1024      # explicit scoped-VMEM limit (safe on v5e/v6e/v7x)
_BYTES_BUDGET = 24 * 1024 * 1024          # ~double-buffered in+out block budget


# ----------------------------------------------------------------------------
# shared helper: k-tap 'same' conv over channels + sigmoid, O(k*C)
# ----------------------------------------------------------------------------
def _conv_sigmoid_weights(avg, mx, cw_ref, cb_ref, pa_ref, pm_ref):
    """avg, mx: (C, 1) f32 pooled vectors.
    cw_ref: SMEM (2, k) conv weights; cb_ref: SMEM (1,) bias.
    pa_ref / pm_ref: VMEM (lead + C + pad, 1) f32 zero-padded staging buffers,
    lead = round_up(pad, 8) so the interior store is sublane-aligned."""
    C = avg.shape[0]
    k = cw_ref.shape[1]
    pad = (k - 1) // 2
    lead = pa_ref.shape[0] - C - pad

    # zero 'same' padding, then place the pooled vectors at the aligned interior
    pa_ref[...] = jnp.zeros(pa_ref.shape, jnp.float32)
    pm_ref[...] = jnp.zeros(pm_ref.shape, jnp.float32)
    pa_ref[pl.ds(lead, C), :] = avg
    pm_ref[pl.ds(lead, C), :] = mx

    bias = cb_ref[0]
    logits = jnp.zeros((C, 1), jnp.float32) + bias
    for t in range(k):                      # k is tiny (3/5/7) -> static unroll
        off = lead - pad + t                # window element c -> channel (c + t - pad)
        logits = logits + cw_ref[0, t] * pa_ref[pl.ds(off, C), :]
        logits = logits + cw_ref[1, t] * pm_ref[pl.ds(off, C), :]
    return jax.nn.sigmoid(logits)           # (C, 1), sigmoid goes to the EUP


# ----------------------------------------------------------------------------
# resident path: one kernel per batch element, whole (C, HW) block in VMEM
# ----------------------------------------------------------------------------
def _eca_resident_kernel(x_ref, cw_ref, cb_ref, o_ref, pa_ref, pm_ref):
    xf = x_ref[...].astype(jnp.float32)                         # (C, HW)
    inv_hw = 1.0 / x_ref.shape[-1]                              # static
    avg = jnp.sum(xf, axis=-1, keepdims=True) * inv_hw          # (C, 1)
    mx = jnp.max(xf, axis=-1, keepdims=True)                    # (C, 1)
    w = _conv_sigmoid_weights(avg, mx, cw_ref, cb_ref, pa_ref, pm_ref)
    o_ref[...] = (xf * w).astype(o_ref.dtype)


def _eca_resident(x3, cw, cb):
    B, C, HW = x3.shape
    k = cw.shape[1]
    pad = (k - 1) // 2
    lead = ((pad + 7) // 8) * 8
    itemsize = jnp.dtype(x3.dtype).itemsize

    return pl.pallas_call(
        _eca_resident_kernel,
        out_shape=jax.ShapeDtypeStruct((B, C, HW), x3.dtype),
        grid=(B,),
        in_specs=[
            pl.BlockSpec((pl.Squeezed(), C, HW), lambda b: (b, 0, 0)),
            pl.BlockSpec(memory_space=pltpu.MemorySpace.SMEM),
            pl.BlockSpec(memory_space=pltpu.MemorySpace.SMEM),
        ],
        out_specs=pl.BlockSpec((pl.Squeezed(), C, HW), lambda b: (b, 0, 0)),
        scratch_shapes=[
            pltpu.VMEM((lead + C + pad, 1), jnp.float32),
            pltpu.VMEM((lead + C + pad, 1), jnp.float32),
        ],
        compiler_params=pltpu.CompilerParams(
            dimension_semantics=("parallel",),
            vmem_limit_bytes=_VMEM_LIMIT_BYTES),
        cost_estimate=pl.CostEstimate(
            flops=4 * B * C * HW,
            transcendentals=B * C,
            bytes_accessed=2 * B * C * HW * itemsize),
    )(x3, cw, cb)


# ----------------------------------------------------------------------------
# tiled two-pass path: pass 1 pools (HW axis "arbitrary"), pass 2 multiplies
# ----------------------------------------------------------------------------
def _make_reduce_kernel(inv_hw):
    def kernel(x_ref, cw_ref, cb_ref, w_ref, sum_acc, max_acc, pa_ref, pm_ref):
        h = pl.program_id(1)

        @pl.when(h == 0)
        def _init():
            sum_acc[...] = jnp.zeros_like(sum_acc)
            max_acc[...] = jnp.full_like(max_acc, -jnp.inf)

        xf = x_ref[...].astype(jnp.float32)                     # (C, hw_tile)
        sum_acc[...] = sum_acc[...] + jnp.sum(xf, axis=-1, keepdims=True)
        max_acc[...] = jnp.maximum(max_acc[...],
                                   jnp.max(xf, axis=-1, keepdims=True))

        @pl.when(h == pl.num_programs(1) - 1)
        def _finalize():
            avg = sum_acc[...] * inv_hw
            w_ref[...] = _conv_sigmoid_weights(avg, max_acc[...],
                                               cw_ref, cb_ref, pa_ref, pm_ref)
    return kernel


def _eca_apply_kernel(x_ref, w_ref, o_ref):
    xf = x_ref[...].astype(jnp.float32)                         # (C, hw_tile)
    o_ref[...] = (xf * w_ref[...]).astype(o_ref.dtype)


def _eca_tiled(x3, cw, cb, hw_tile):
    B, C, HW = x3.shape
    n_hw = HW // hw_tile
    k = cw.shape[1]
    pad = (k - 1) // 2
    lead = ((pad + 7) // 8) * 8
    itemsize = jnp.dtype(x3.dtype).itemsize

    # pass 1: pooled -> per-channel sigmoid weights (B, C, 1)
    w = pl.pallas_call(
        _make_reduce_kernel(1.0 / HW),
        out_shape=jax.ShapeDtypeStruct((B, C, 1), jnp.float32),
        grid=(B, n_hw),
        in_specs=[
            pl.BlockSpec((pl.Squeezed(), C, hw_tile), lambda b, h: (b, 0, h)),
            pl.BlockSpec(memory_space=pltpu.MemorySpace.SMEM),
            pl.BlockSpec(memory_space=pltpu.MemorySpace.SMEM),
        ],
        out_specs=pl.BlockSpec((pl.Squeezed(), C, 1), lambda b, h: (b, 0, 0)),
        scratch_shapes=[
            pltpu.VMEM((C, 1), jnp.float32),                    # running sum
            pltpu.VMEM((C, 1), jnp.float32),                    # running max
            pltpu.VMEM((lead + C + pad, 1), jnp.float32),
            pltpu.VMEM((lead + C + pad, 1), jnp.float32),
        ],
        compiler_params=pltpu.CompilerParams(
            dimension_semantics=("parallel", "arbitrary"),
            vmem_limit_bytes=_VMEM_LIMIT_BYTES),
        cost_estimate=pl.CostEstimate(
            flops=2 * B * C * HW,
            transcendentals=B * C,
            bytes_accessed=B * C * HW * itemsize),
    )(x3, cw, cb)

    # pass 2: broadcast multiply, lane-dense tiles, fully parallel grid.
    # w's block index stays (b,0,0) across the inner hw axis, so it is only
    # fetched once per batch element.
    out = pl.pallas_call(
        _eca_apply_kernel,
        out_shape=jax.ShapeDtypeStruct((B, C, HW), x3.dtype),
        grid=(B, n_hw),
        in_specs=[
            pl.BlockSpec((pl.Squeezed(), C, hw_tile), lambda b, h: (b, 0, h)),
            pl.BlockSpec((pl.Squeezed(), C, 1), lambda b, h: (b, 0, 0)),
        ],
        out_specs=pl.BlockSpec((pl.Squeezed(), C, hw_tile), lambda b, h: (b, 0, h)),
        compiler_params=pltpu.CompilerParams(
            dimension_semantics=("parallel", "parallel"),
            vmem_limit_bytes=_VMEM_LIMIT_BYTES),
        cost_estimate=pl.CostEstimate(
            flops=B * C * HW,
            transcendentals=0,
            bytes_accessed=2 * B * C * HW * itemsize),
    )(x3, w)
    return out


# ----------------------------------------------------------------------------
# public wrapper
# ----------------------------------------------------------------------------
def eca_k_size(in_channels, gamma=2, bias=1):
    k = int(abs(math.log(in_channels, 2) + bias) / gamma)
    return k if k % 2 else k + 1


def _choose_hw_tile(HW, C, itemsize):
    """Largest multiple-of-128 divisor of HW whose double-buffered in+out blocks
    fit the VMEM budget (bigger tiles -> less per-step overhead, unmasked vst)."""
    max_t = _BYTES_BUDGET // (4 * C * itemsize)
    max_t = (max_t // 128) * 128
    best = None
    t = 128
    while t <= min(HW, max_t):
        if HW % t == 0:
            best = t
        t += 128
    return best


def eca_block_v2(x, conv_w, conv_b, *, hw_tile=None):
    """x: (B, C, H, W); conv_w: (1, 2, k); conv_b: (1,).  hw_tile=None -> auto."""
    B, C, H, W = x.shape
    HW = H * W
    k = conv_w.shape[-1]
    itemsize = jnp.dtype(x.dtype).itemsize

    x3 = x.reshape(B, C, HW)
    cw = conv_w.reshape(2, k).astype(jnp.float32)
    cb = conv_b.reshape(1).astype(jnp.float32)

    if hw_tile is None:
        if 4 * C * HW * itemsize <= _BYTES_BUDGET:
            hw_tile = 0                                   # resident path
        else:
            hw_tile = _choose_hw_tile(HW, C, itemsize) or 0
            # TODO(synk): if HW has no 128-multiple divisor and the full image does
            # not fit VMEM, a masked/padded HW tiling would be needed; we fall back
            # to the resident path here.

    if hw_tile == 0 or hw_tile >= HW:
        out3 = _eca_resident(x3, cw, cb)
    else:
        assert HW % hw_tile == 0, "hw_tile must divide H*W"
        out3 = _eca_tiled(x3, cw, cb, hw_tile)
    return out3.reshape(B, C, H, W)


# ----------------------------------------------------------------------------
# pure-JAX reference (mirrors the PyTorch forward)
# ----------------------------------------------------------------------------
def eca_block_v2_ref(x, conv_w, conv_b):
    avg = jnp.mean(x, axis=(2, 3))                       # (B, C)
    mx = jnp.max(x, axis=(2, 3))                         # (B, C)
    inp = jnp.stack([avg, mx], axis=1)                   # (B, 2, C)
    k = conv_w.shape[-1]
    pad = (k - 1) // 2
    out = jax.lax.conv_general_dilated(
        inp, conv_w, window_strides=(1,), padding=[(pad, pad)],
        dimension_numbers=("NCH", "OIH", "NCH")) + conv_b[None, :, None]
    w = jax.nn.sigmoid(out)                              # (B, 1, C)
    return x * w[:, 0, :, None, None]


if __name__ == "__main__":
    key = jax.random.PRNGKey(0)

    # --- test 1: resident (single-pass) path -------------------------------
    B, C, H, W = 2, 16, 16, 16
    k_size = eca_k_size(C)                               # C=16 -> k=3
    kx, kw, kb, kx2, kw2, kb2 = jax.random.split(key, 6)
    x = jax.random.normal(kx, (B, C, H, W), jnp.float32)
    conv_w = 0.5 * jax.random.normal(kw, (1, 2, k_size), jnp.float32)
    conv_b = 0.1 * jax.random.normal(kb, (1,), jnp.float32)

    out = jax.block_until_ready(eca_block_v2(x, conv_w, conv_b))
    ref = eca_block_v2_ref(x, conv_w, conv_b)
    assert out.shape == x.shape and out.dtype == x.dtype
    assert jnp.allclose(out, ref, atol=1e-5, rtol=1e-5), "resident path mismatch"

    # --- test 2: tiled two-pass path (forced HW tiling) ---------------------
    B2, C2, H2, W2 = 2, 32, 32, 32
    k2 = eca_k_size(C2)                                  # C=32 -> k=3
    x2 = jax.random.normal(kx2, (B2, C2, H2, W2), jnp.float32)
    conv_w2 = 0.5 * jax.random.normal(kw2, (1, 2, k2), jnp.float32)
    conv_b2 = 0.1 * jax.random.normal(kb2, (1,), jnp.float32)

    out2 = jax.block_until_ready(eca_block_v2(x2, conv_w2, conv_b2, hw_tile=128))
    ref2 = eca_block_v2_ref(x2, conv_w2, conv_b2)
    assert out2.shape == x2.shape and out2.dtype == x2.dtype
    assert jnp.allclose(out2, ref2, atol=1e-5, rtol=1e-5), "tiled path mismatch"

    print("KERNEL_OK")
</pallas_src>

<mosaic_0001>
module attributes {stable_mosaic.version = 11 : i64} {
  func.func @_eca_resident_kernel(%arg0: i32, %arg1: memref<1x16x256xf32, #tpu.memory_space<vmem>>, %arg2: memref<2x3xf32, #tpu.memory_space<smem>>, %arg3: memref<1xf32, #tpu.memory_space<smem>>, %arg4: memref<1x16x256xf32, #tpu.memory_space<vmem>>, %arg5: memref<25x1xf32, #tpu.memory_space<vmem>>, %arg6: memref<25x1xf32, #tpu.memory_space<vmem>>) attributes {dimension_semantics = [#tpu.dimension_semantics<parallel>], iteration_bounds = array<i64: 2>, scalar_prefetch = 0 : i64, scratch_operands = 2 : i64, tpu.core_type = #tpu.core_type<tc>, window_params = [{transform_indices = @transform_0, window_bounds = array<i64: 1, 16, 256>}, {transform_indices = @transform_1, window_bounds = array<i64: 2, 3>}, {transform_indices = @transform_2, window_bounds = array<i64: 1>}, {transform_indices = @transform_3, window_bounds = array<i64: 1, 16, 256>}]} {
    %c0 = arith.constant 0 : index
    %c0_0 = arith.constant 0 : index
    %c0_1 = arith.constant 0 : index
    %0 = vector.load %arg1[%c0, %c0_0, %c0_1] : memref<1x16x256xf32, #tpu.memory_space<vmem>>, vector<1x16x256xf32>
    %1 = vector.shape_cast %0 : vector<1x16x256xf32> to vector<16x256xf32>
    %cst = arith.constant dense<0.000000e+00> : vector<16xf32>
    %2 = vector.multi_reduction <add>, %1, %cst [1] : vector<16x256xf32> to vector<16xf32>
    %3 = vector.shape_cast %2 : vector<16xf32> to vector<16x1xf32>
    %cst_2 = arith.constant 3.906250e-03 : f32
    %4 = vector.broadcast %cst_2 : f32 to vector<16x1xf32>
    %5 = arith.mulf %3, %4 : vector<16x1xf32>
    %cst_3 = arith.constant dense<0xFF800000> : vector<16xf32>
    %6 = vector.multi_reduction <maximumf>, %1, %cst_3 [1] : vector<16x256xf32> to vector<16xf32>
    %7 = vector.shape_cast %6 : vector<16xf32> to vector<16x1xf32>
    %cst_4 = arith.constant 0.000000e+00 : f32
    %8 = vector.broadcast %cst_4 : f32 to vector<25x1xf32>
    %c0_5 = arith.constant 0 : index
    %c0_6 = arith.constant 0 : index
    %9 = vector.load %arg5[%c0_5, %c0_6] : memref<25x1xf32, #tpu.memory_space<vmem>>, vector<25x1xf32>
    tpu.vector_store %arg5[%c0_5, %c0_6], %8 {strides = array<i32>} : memref<25x1xf32, #tpu.memory_space<vmem>>, vector<25x1xf32>,
    %cst_7 = arith.constant 0.000000e+00 : f32
    %10 = vector.broadcast %cst_7 : f32 to vector<25x1xf32>
    %c0_8 = arith.constant 0 : index
    %c0_9 = arith.constant 0 : index
    %11 = vector.load %arg6[%c0_8, %c0_9] : memref<25x1xf32, #tpu.memory_space<vmem>>, vector<25x1xf32>
    tpu.vector_store %arg6[%c0_8, %c0_9], %10 {strides = array<i32>} : memref<25x1xf32, #tpu.memory_space<vmem>>, vector<25x1xf32>,
    %c8 = arith.constant 8 : index
    %c0_10 = arith.constant 0 : index
    %12 = vector.load %arg5[%c8, %c0_10] : memref<25x1xf32, #tpu.memory_space<vmem>>, vector<16x1xf32>
    tpu.vector_store %arg5[%c8, %c0_10], %5 {strides = array<i32>} : memref<25x1xf32, #tpu.memory_space<vmem>>, vector<16x1xf32>,
    %c8_11 = arith.constant 8 : index
    %c0_12 = arith.constant 0 : index
    %13 = vector.load %arg6[%c8_11, %c0_12] : memref<25x1xf32, #tpu.memory_space<vmem>>, vector<16x1xf32>
    tpu.vector_store %arg6[%c8_11, %c0_12], %7 {strides = array<i32>} : memref<25x1xf32, #tpu.memory_space<vmem>>, vector<16x1xf32>,
    %c0_13 = arith.constant 0 : index
    %14 = memref.load %arg3[%c0_13] : memref<1xf32, #tpu.memory_space<smem>>
    %cst_14 = arith.constant 0.000000e+00 : f32
    %15 = vector.broadcast %cst_14 : f32 to vector<16x1xf32>
    %16 = vector.broadcast %14 : f32 to vector<16x1xf32>
    %17 = arith.addf %15, %16 : vector<16x1xf32>
    %c0_15 = arith.constant 0 : index
    %c0_16 = arith.constant 0 : index
    %18 = memref.load %arg2[%c0_15, %c0_16] : memref<2x3xf32, #tpu.memory_space<smem>>
    %c7 = arith.constant 7 : index
    %c0_17 = arith.constant 0 : index
    %19 = vector.load %arg5[%c7, %c0_17] : memref<25x1xf32, #tpu.memory_space<vmem>>, vector<16x1xf32>
    %20 = vector.broadcast %18 : f32 to vector<16x1xf32>
    %21 = arith.mulf %20, %19 : vector<16x1xf32>
    %22 = arith.addf %17, %21 : vector<16x1xf32>
    %c1 = arith.constant 1 : index
    %c0_18 = arith.constant 0 : index
    %23 = memref.load %arg2[%c1, %c0_18] : memref<2x3xf32, #tpu.memory_space<smem>>
    %c7_19 = arith.constant 7 : index
    %c0_20 = arith.constant 0 : index
    %24 = vector.load %arg6[%c7_19, %c0_20] : memref<25x1xf32, #tpu.memory_space<vmem>>, vector<16x1xf32>
    %25 = vector.broadcast %23 : f32 to vector<16x1xf32>
    %26 = arith.mulf %25, %24 : vector<16x1xf32>
    %27 = arith.addf %22, %26 : vector<16x1xf32>
    %c0_21 = arith.constant 0 : index
    %c1_22 = arith.constant 1 : index
    %28 = memref.load %arg2[%c0_21, %c1_22] : memref<2x3xf32, #tpu.memory_space<smem>>
    %c8_23 = arith.constant 8 : index
    %c0_24 = arith.constant 0 : index
    %29 = vector.load %arg5[%c8_23, %c0_24] : memref<25x1xf32, #tpu.memory_space<vmem>>, vector<16x1xf32>
    %30 = vector.broadcast %28 : f32 to vector<16x1xf32>
    %31 = arith.mulf %30, %29 : vector<16x1xf32>
    %32 = arith.addf %27, %31 : vector<16x1xf32>
    %c1_25 = arith.constant 1 : index
    %c1_26 = arith.constant 1 : index
    %33 = memref.load %arg2[%c1_25, %c1_26] : memref<2x3xf32, #tpu.memory_space<smem>>
    %c8_27 = arith.constant 8 : index
    %c0_28 = arith.constant 0 : index
    %34 = vector.load %arg6[%c8_27, %c0_28] : memref<25x1xf32, #tpu.memory_space<vmem>>, vector<16x1xf32>
    %35 = vector.broadcast %33 : f32 to vector<16x1xf32>
    %36 = arith.mulf %35, %34 : vector<16x1xf32>
    %37 = arith.addf %32, %36 : vector<16x1xf32>
    %c0_29 = arith.constant 0 : index
    %c2 = arith.constant 2 : index
    %38 = memref.load %arg2[%c0_29, %c2] : memref<2x3xf32, #tpu.memory_space<smem>>
    %c9 = arith.constant 9 : index
    %c0_30 = arith.constant 0 : index
    %39 = vector.load %arg5[%c9, %c0_30] : memref<25x1xf32, #tpu.memory_space<vmem>>, vector<16x1xf32>
    %40 = vector.broadcast %38 : f32 to vector<16x1xf32>
    %41 = arith.mulf %40, %39 : vector<16x1xf32>
    %42 = arith.addf %37, %41 : vector<16x1xf32>
    %c1_31 = arith.constant 1 : index
    %c2_32 = arith.constant 2 : index
    %43 = memref.load %arg2[%c1_31, %c2_32] : memref<2x3xf32, #tpu.memory_space<smem>>
    %c9_33 = arith.constant 9 : index
    %c0_34 = arith.constant 0 : index
    %44 = vector.load %arg6[%c9_33, %c0_34] : memref<25x1xf32, #tpu.memory_space<vmem>>, vector<16x1xf32>
    %45 = vector.broadcast %43 : f32 to vector<16x1xf32>
    %46 = arith.mulf %45, %44 : vector<16x1xf32>
    %47 = arith.addf %42, %46 : vector<16x1xf32>
    %48 = arith.negf %47 : vector<16x1xf32>
    %49 = math.exp %48 : vector<16x1xf32>
    %cst_35 = arith.constant 1.000000e+00 : f32
    %50 = vector.broadcast %cst_35 : f32 to vector<16x1xf32>
    %51 = arith.addf %50, %49 : vector<16x1xf32>
    %52 = arith.divf %50, %51 : vector<16x1xf32>
    %53 = vector.broadcast %52 : vector<16x1xf32> to vector<16x256xf32>
    %54 = arith.mulf %1, %53 : vector<16x256xf32>
    %c0_36 = arith.constant 0 : index
    %c0_37 = arith.constant 0 : index
    %c0_38 = arith.constant 0 : index
    %55 = vector.load %arg4[%c0_36, %c0_37, %c0_38] : memref<1x16x256xf32, #tpu.memory_space<vmem>>, vector<1x16x256xf32>
    %56 = vector.shape_cast %55 : vector<1x16x256xf32> to vector<16x256xf32>
    %57 = vector.shape_cast %54 : vector<16x256xf32> to vector<1x16x256xf32>
    tpu.vector_store %arg4[%c0_36, %c0_37, %c0_38], %57 {strides = array<i32>} : memref<1x16x256xf32, #tpu.memory_space<vmem>>, vector<1x16x256xf32>,
    return
  }
  func.func @transform_0(%arg0: i32) -> (i32, i32, i32) {
    %c0_i32 = arith.constant 0 : i32
    %c0_i32_0 = arith.constant 0 : i32
    %c0_i32_1 = arith.constant 0 : i32
    return %arg0, %c0_i32, %c0_i32_0 : i32, i32, i32
  }
  func.func @transform_1(%arg0: i32) -> (i32, i32) {
    %c0_i32 = arith.constant 0 : i32
    %c0_i32_0 = arith.constant 0 : i32
    %c0_i32_1 = arith.constant 0 : i32
    return %c0_i32, %c0_i32_0 : i32, i32
  }
  func.func @transform_2(%arg0: i32) -> i32 {
    %c0_i32 = arith.constant 0 : i32
    %c0_i32_0 = arith.constant 0 : i32
    return %c0_i32 : i32
  }
  func.func @transform_3(%arg0: i32) -> (i32, i32, i32) {
    %c0_i32 = arith.constant 0 : i32
    %c0_i32_0 = arith.constant 0 : i32
    %c0_i32_1 = arith.constant 0 : i32
    return %arg0, %c0_i32, %c0_i32_0 : i32, i32, i32
  }
}

</mosaic_0001>

<llo_original>
// kernel: tpu_custom_call.1
$region0: #{tpu_custom_call.1}
  #allocation0 [shape = 'u32[]', space=smem, size = 0x4, offset = 0x4, fixed_abs, tag = 'smem constant byte address 0x4 - core index']
  #allocation1 [shape = 'u32[144,128]{1,0:T(1,128)}', space=vmem, size = 0x12000, scoped, tag = 'internal scratch']
  #allocation2 [shape = 'f32[25,1]{1,0:T(8,128)}', space=vmem, size = 0x4000, scoped, tag = 'scratch operand']
  #allocation3 [shape = 'f32[25,1]{1,0:T(8,128)}', space=vmem, size = 0x4000, scoped, tag = 'scratch operand']
  #allocation4 [shape = 'f32[1]{0:T(128)S(6)}', space=smem, size = 0x200, scoped, tag = 'scoped memory for tpu_custom_call.1']
  %s0 = inlined_call_operand.hbm [shape: f32[2,16,256], index: 0, kind: input, shape index: {}]
  %s1 = inlined_call_operand.vmem [shape: f32[2,3], index: 1, kind: input, shape index: {}]
  %s2 = inlined_call_operand.<no memory space> [shape: f32[1], index: 2, kind: input, shape index: {}]
  %s3 = inlined_call_operand.hbm [shape: f32[2,16,256], index: 3, kind: output, shape index: {}]
  %s4 = sld [smem:[#allocation0]]
  $region53: #{tpu_custom_call.1} parent=0
    _
  %s6 = ssub.s32 1, %s4
  %s7 = scalar_select 0, %s6, %s4
  %8 = sst [smem:[#allocation4]] %s2
  $region1: #{tpu_custom_call.1} parent=0
    #allocation5 [shape = 'u8[32768]{0}', space=vmem, size = 0x8000, scoped, tag = 'input window, operand 0']
    #allocation6 [shape = 's32[2]{0}', space=sflag, size = 0x8, scoped, tag = 'scoped memory for tpu_custom_call.1']
    #allocation7 [shape = 's32[2]{0}', space=sflag, size = 0x8, scoped, tag = 'scoped memory for tpu_custom_call.1']
    #allocation8 [shape = 's32[2]{0}', space=sflag, size = 0x8, scoped, tag = 'scoped memory for tpu_custom_call.1']
    #allocation9 [shape = 'u8[1024]{0}', space=smem, size = 0x400, scoped, tag = 'input window, operand 1, single buffered']
    #allocation10 [shape = 'u8[32768]{0}', space=vmem, size = 0x8000, scoped, tag = 'output window, operand 0']
    %9 = vsyncpa [#allocation6], 0
    %s10 = scalar_lea.sflag [#allocation6], 1
    %11 = vsyncpa %s10, 0
    %12 = vsyncpa [#allocation8], 0
    %13 = vsyncpa [#allocation7], 0
    %s14 = scalar_lea.sflag [#allocation7], 1
    %15 = vsyncpa %s14, 0
    loop: start=0, step=1, limit=4
    $region2: #{tpu_custom_call.1} parent=1 // loop_pre_header
      _
    $region3: #{tpu_custom_call.1} parent=1 // loop_header
      %s17 = sphi 0, %s21
      %p18 = scmp.ge.s32.totalorder %s17, 4
      %s27 = sphi 0, %s29
      %s30 = sphi 0, %s27
      %s31 = sphi 0, %s30
      %s47 = sphi 0, %s31
      %s51 = sphi 0, %s51
      %s53 = sphi 0, %s51
      %s54 = sphi 0, %s53
      %s68 = sphi 0, %s54
      %s72 = sphi 0, %s72
      %s74 = sphi 0, %s72
      %s75 = sphi 0, %s74
      %s89 = sphi 0, %s75
      %s95 = sphi 0, %s97
      %s98 = sphi 0, %s95
      %s99 = sphi 0, %s98
      %s115 = sphi 0, %s99
    $region4: #{tpu_custom_call.1} parent=1 // loop_header_branch
      %20 = sbr.rel (%p18) target = $region8
    $region5: #{tpu_custom_call.1} parent=1 // loop_body
      %s22 = ssub.s32 %s17, 1
      %s23 = ssub.s32 %s17, 2
      %s24 = sadd.s32 %s17, 1
      %s25 = ssub.s32 %s17, %s24
      %p26 = scmp.eq.s32.totalorder %s25, 0
      %s28 = sadd.s32 %s27, 1
      %s29 = scalar_select %p26, %s27, %s28
      %p32 = pneg %p26
      %p33 = scmp.eq.s32.totalorder %s17, 1
      %p34 = por %p32, %p33
      %p35 = scmp.ne.s32.totalorder %s27, %s30
      %p36 = scmp.eq.s32.totalorder %s17, 0
      %p37 = por %p35, %p36
      %p38 = scmp.ne.s32.totalorder %s27, %s30
      %p39 = scmp.eq.s32.totalorder %s22, 1
      %p40 = por %p38, %p39
      %p41 = scmp.ne.s32.totalorder %s30, %s31
      %p42 = scmp.eq.s32.totalorder %s22, 0
      %p43 = por %p41, %p42
      %p44 = scmp.ne.s32.totalorder %s30, %s31
      %p45 = scmp.eq.s32.totalorder %s23, 1
      %p46 = por %p44, %p45
      %p48 = scmp.ne.s32.totalorder %s31, %s47
      %p49 = scmp.eq.s32.totalorder %s23, 0
      %p50 = por %p48, %p49
      %s52 = sadd.s32 %s51, 1
      %p55 = scmp.eq.s32.totalorder %s17, 1
      %p56 = scmp.ne.s32.totalorder %s51, %s53
      %p57 = scmp.eq.s32.totalorder %s17, 0
      %p58 = por %p56, %p57
      %p59 = scmp.ne.s32.totalorder %s51, %s53
      %p60 = scmp.eq.s32.totalorder %s22, 1
      %p61 = por %p59, %p60
      %p62 = scmp.ne.s32.totalorder %s53, %s54
      %p63 = scmp.eq.s32.totalorder %s22, 0
      %p64 = por %p62, %p63
      %p65 = scmp.ne.s32.totalorder %s53, %s54
      %p66 = scmp.eq.s32.totalorder %s23, 1
      %p67 = por %p65, %p66
      %p69 = scmp.ne.s32.totalorder %s54, %s68
      %p70 = scmp.eq.s32.totalorder %s23, 0
      %p71 = por %p69, %p70
      %s73 = sadd.s32 %s72, 1
      %p76 = scmp.eq.s32.totalorder %s17, 1
      %p77 = scmp.ne.s32.totalorder %s72, %s74
      %p78 = scmp.eq.s32.totalorder %s17, 0
      %p79 = por %p77, %p78
      %p80 = scmp.ne.s32.totalorder %s72, %s74
      %p81 = scmp.eq.s32.totalorder %s22, 1
      %p82 = por %p80, %p81
      %p83 = scmp.ne.s32.totalorder %s74, %s75
      %p84 = scmp.eq.s32.totalorder %s22, 0
      %p85 = por %p83, %p84
      %p86 = scmp.ne.s32.totalorder %s74, %s75
      %p87 = scmp.eq.s32.totalorder %s23, 1
      %p88 = por %p86, %p87
      %p90 = scmp.ne.s32.totalorder %s75, %s89
      %p91 = scmp.eq.s32.totalorder %s23, 0
      %p92 = por %p90, %p91
      %s93 = ssub.s32 %s17, %s24
      %p94 = scmp.eq.s32.totalorder %s93, 0
      %s96 = sadd.s32 %s95, 1
      %s97 = scalar_select %p94, %s95, %s96
      %p100 = pneg %p94
      %p101 = scmp.eq.s32.totalorder %s17, 1
      %p102 = por %p100, %p101
      %p103 = scmp.ne.s32.totalorder %s95, %s98
      %p104 = scmp.eq.s32.totalorder %s17, 0
      %p105 = por %p103, %p104
      %p106 = scmp.ne.s32.totalorder %s95, %s98
      %p107 = scmp.eq.s32.totalorder %s22, 1
      %p108 = por %p106, %p107
      %p109 = scmp.ne.s32.totalorder %s98, %s99
      %p110 = scmp.eq.s32.totalorder %s22, 0
      %p111 = por %p109, %p110
      %p112 = scmp.ne.s32.totalorder %s98, %s99
      %p113 = scmp.eq.s32.totalorder %s23, 1
      %p114 = por %p112, %p113
      %p116 = scmp.ne.s32.totalorder %s99, %s115
      %p117 = scmp.eq.s32.totalorder %s23, 0
      %p118 = por %p116, %p117
      %p119 = scmp.le.s32.totalorder 1, %s17
      %p120 = scmp.lt.s32.totalorder %s17, 3
      %p121 = pnand %p119, %p120
      %p122 = pneg %p121
      // Predicated region
      $region9: #{tpu_custom_call.1} parent=5 // pred_check
        _
      $region10: #{tpu_custom_call.1} parent=5 // pred_check_branch
        %124 = sbr.rel (%p121) target = $region12
      $region11: #{tpu_custom_call.1} parent=5 // pred_region
        %s125 = ssub.s32 %s17, 1
        // Predicated region
        $region13: #{tpu_custom_call.1} parent=11 // pred_check
          %p126 = pneg %p64
        $region14: #{tpu_custom_call.1} parent=11 // pred_check_branch
          %128 = sbr.rel (%p126) target = $region16
        $region15: #{tpu_custom_call.1} parent=11 // pred_region
          %s130 = ssub.s32 32, 32
          %131 = vsyncadd [#allocation8], %s130
          %s133 = sshll.u32 %s1, 4
          %s134 = int_to_ptr.vmem [resolvable:$true] %s133
          %136 = dma.vmem_to_smem %s134, 32, [#allocation9], [#allocation8]
        $region16: #{tpu_custom_call.1} parent=11 // pred_fallthru
          _
        // Predicated region
        $region17: #{tpu_custom_call.1} parent=11 // pred_check
          %p137 = pneg %p85
        $region18: #{tpu_custom_call.1} parent=11 // pred_check_branch
          %139 = sbr.rel (%p137) target = $region20
        $region19: #{tpu_custom_call.1} parent=11 // pred_region
          _
        $region20: #{tpu_custom_call.1} parent=11 // pred_fallthru
          _
      $region12: #{tpu_custom_call.1} parent=5 // pred_fallthru
        _
      %p140 = scmp.lt.s32.totalorder %s17, 2
      // Predicated region
      $region21: #{tpu_custom_call.1} parent=5 // pred_check
        %p141 = pneg %p140
      $region22: #{tpu_custom_call.1} parent=5 // pred_check_branch
        %143 = sbr.rel (%p141) target = $region24
      $region23: #{tpu_custom_call.1} parent=5 // pred_region
        // Predicated region
        $region25: #{tpu_custom_call.1} parent=23 // pred_check
          %p144 = pneg %p37
        $region26: #{tpu_custom_call.1} parent=23 // pred_check_branch
          %146 = sbr.rel (%p144) target = $region28
        $region27: #{tpu_custom_call.1} parent=23 // pred_region
          %s147 = sand.u32 %s27, 1
          %s148 = scalar_lea.sflag [#allocation6], %s147
          %s149 = sand.u32 %s27, 1
          %s150 = smul.addr %s149, 32
          %s151 = scalar_lea.vmem [#allocation5], %s150
          %s153 = ssub.s32 512, 512
          %154 = vsyncadd %s148, %s153
          %s155 = smul.addr %s17, 4
          %s156 = smul.addr %s155, 128
          %s157 = scalar_lea.hbm %s0, %s156
          %s158 = sshll.u32 %s151, 4
          %s159 = int_to_ptr.vmem [resolvable:$true] %s158
          %164 = dma.hbm_to_vmem [thread:$0]  %s157, 512, %s159, %s148, 256, 256, 16
        $region28: #{tpu_custom_call.1} parent=23 // pred_fallthru
          _
      $region24: #{tpu_custom_call.1} parent=5 // pred_fallthru
        _
      %p165 = scmp.le.s32.totalorder 1, %s17
      %p166 = scmp.lt.s32.totalorder %s17, 3
      %p167 = pnand %p165, %p166
      %p168 = pneg %p167
      // Predicated region
      $region29: #{tpu_custom_call.1} parent=5 // pred_check
        _
      $region30: #{tpu_custom_call.1} parent=5 // pred_check_branch
        %170 = sbr.rel (%p167) target = $region32
      $region31: #{tpu_custom_call.1} parent=5 // pred_region
        %s171 = ssub.s32 %s17, 1
        %s172 = sand.u32 %s30, 1
        %s173 = scalar_lea.sflag [#allocation6], %s172
        %s174 = sand.u32 %s30, 1
        %s175 = smul.addr %s174, 32
        %s176 = scalar_lea.vmem [#allocation5], %s175
        // Predicated region
        $region33: #{tpu_custom_call.1} parent=31 // pred_check
          %p177 = pneg %p43
        $region34: #{tpu_custom_call.1} parent=31 // pred_check_branch
          %179 = sbr.rel (%p177) target = $region36
        $region35: #{tpu_custom_call.1} parent=31 // pred_region
          %180 = dma.done %s173, 512
        $region36: #{tpu_custom_call.1} parent=31 // pred_fallthru
          _
        // Predicated region
        $region37: #{tpu_custom_call.1} parent=31 // pred_check
          %p181 = pneg %p64
        $region38: #{tpu_custom_call.1} parent=31 // pred_check_branch
          %183 = sbr.rel (%p181) target = $region40
        $region39: #{tpu_custom_call.1} parent=31 // pred_region
          %184 = dma.done [#allocation8], 32
        $region40: #{tpu_custom_call.1} parent=31 // pred_fallthru
          _
        %185 = sfence
        %s186 = sand.u32 %s30, 1
        %s187 = scalar_lea.sflag [#allocation6], %s186
        %s188 = sand.u32 %s30, 1
        %s189 = smul.addr %s188, 32
        %s190 = scalar_lea.vmem [#allocation5], %s189
        %p191 = pneg %p43
        %p192 = pneg %p40
        %p193 = pneg %p64
        %p194 = pneg %p61
        %p195 = pneg %p85
        %p196 = pneg %p82
        %p197 = pneg %p111
        %p198 = pneg %p108
        %s199 = sand.u32 %s98, 1
        %s200 = scalar_lea.sflag [#allocation7], %s199
        %s201 = sand.u32 %s98, 1
        %s202 = smul.addr %s201, 32
        %s203 = scalar_lea.vmem [#allocation10], %s202
        %v204 = vld [vmem:[%s176] sm:$0xff]
        %v205 = vld [vmem:[%s176 + $0x8] sm:$0xff]
        %v206 = vld [vmem:[%s176 + $0x10] sm:$0xff]
        %v207 = vld [vmem:[%s176 + $0x18] sm:$0xff]
        %v208 = vadd.f32 %v204, %v205
        %209 = vadd.xlane.f32.xlu0 %v208
        %v210 = vpop.xlane.xlu0 %209
        %v211 = vadd.f32 %v206, %v207
        %212 = vadd.xlane.f32.xlu0 %v211
        %v213 = vpop.xlane.xlu0 %212
        %v214 = vmul.f32 %v210, 0.00390625
        %v215 = vmul.f32 %v213, 0.00390625
        %v216 = vmax.f32 %v204, %v205
        %217 = vmax.xlane.f32.xlu0 %v216
        %v218 = vpop.xlane.xlu0 %217
        %v219 = vmax.f32 %v206, %v207
        %220 = vmax.xlane.f32.xlu0 %v219
        %v221 = vpop.xlane.xlu0 %220
        %vm222 = vcmask 7168
        %223 = vst.msk [vmem:[#allocation2] sm:$0xff] %vm222, 0.0
        %224 = vst.msk [vmem:[#allocation2 + $0x8] sm:$0xff] %vm222, 0.0
        %225 = vst.msk [vmem:[#allocation2 + $0x10] sm:$0xff] %vm222, 0.0
        %vm226 = vcmask 0
        %227 = vst.msk [vmem:[#allocation2 + $0x18] sm:$0x1] %vm226, 0.0
        %228 = vst.msk [vmem:[#allocation3] sm:$0xff] %vm222, 0.0
        %229 = vst.msk [vmem:[#allocation3 + $0x8] sm:$0xff] %vm222, 0.0
        %230 = vst.msk [vmem:[#allocation3 + $0x10] sm:$0xff] %vm222, 0.0
        %231 = vst.msk [vmem:[#allocation3 + $0x18] sm:$0x1] %vm226, 0.0
        %232 = vst.msk [vmem:[#allocation2 + $0x8] sm:$0xff] %vm222, %v214
        %233 = vst.msk [vmem:[#allocation2 + $0x10] sm:$0xff] %vm222, %v215
        %234 = vst.msk [vmem:[#allocation3 + $0x8] sm:$0xff] %vm222, %v218
        %235 = vst.msk [vmem:[#allocation3 + $0x10] sm:$0xff] %vm222, %v221
        %s236 = sld [smem:[#allocation4]]
        %v237 = vstv %s236
        %v238 = vadd.f32 %v237, 0.0
        %s239 = sld [smem:[#allocation9]]
        %v240 = vld [vmem:[#allocation2 + $0x7] sm:$0xff]
        %v241 = vld [vmem:[#allocation2 + $0xf] sm:$0xff]
        %v242 = vstv %s239
        %v243 = vmul.f32 %v242, %v240
        %v244 = vmul.f32 %v242, %v241
        %v245 = vadd.f32 %v238, %v243
        %v246 = vadd.f32 %v238, %v244
        %s247 = sld [smem:[#allocation9 + $0x80]]
        %v248 = vld [vmem:[#allocation3 + $0x7] sm:$0xff]
        %v249 = vld [vmem:[#allocation3 + $0xf] sm:$0xff]
        %v250 = vstv %s247
        %v251 = vmul.f32 %v250, %v248
        %v252 = vmul.f32 %v250, %v249
        %v253 = vadd.f32 %v245, %v251
        %v254 = vadd.f32 %v246, %v252
        %s255 = sld [smem:[#allocation9 + $0x1]]
        %v256 = vld [vmem:[#allocation2 + $0x8] sm:$0xff]
        %v257 = vld [vmem:[#allocation2 + $0x10] sm:$0xff]
        %v258 = vstv %s255
        %v259 = vmul.f32 %v258, %v256
        %v260 = vmul.f32 %v258, %v257
        %v261 = vadd.f32 %v253, %v259
        %v262 = vadd.f32 %v254, %v260
        %s263 = sld [smem:[#allocation9 + $0x81]]
        %v264 = vld [vmem:[#allocation3 + $0x8] sm:$0xff]
        %v265 = vld [vmem:[#allocation3 + $0x10] sm:$0xff]
        %v266 = vstv %s263
        %v267 = vmul.f32 %v266, %v264
        %v268 = vmul.f32 %v266, %v265
        %v269 = vadd.f32 %v261, %v267
        %v270 = vadd.f32 %v262, %v268
        %s271 = sld [smem:[#allocation9 + $0x2]]
        %v272 = vld [vmem:[#allocation2 + $0x9] sm:$0xff]
        %v273 = vld [vmem:[#allocation2 + $0x11] sm:$0xff]
        %v274 = vstv %s271
        %v275 = vmul.f32 %v274, %v272
        %v276 = vmul.f32 %v274, %v273
        %v277 = vadd.f32 %v269, %v275
        %v278 = vadd.f32 %v270, %v276
        %s279 = sld [smem:[#allocation9 + $0x82]]
        %v280 = vld [vmem:[#allocation3 + $0x9] sm:$0xff]
        %v281 = vld [vmem:[#allocation3 + $0x11] sm:$0xff]
        %v282 = vstv %s279
        %v283 = vmul.f32 %v282, %v280
        %v284 = vmul.f32 %v282, %v281
        %v285 = vadd.f32 %v277, %v283
        %v286 = vadd.f32 %v278, %v284
        %v287 = vxor.u32 %v285, 2147483648
        %v288 = vxor.u32 %v286, 2147483648
        %v289 = vmul.f32 %v287, 1.442695
        %v290 = vpow.pop %v289
        %v291 = vmul.f32 %v288, 1.442695
        %v292 = vpow.pop %v291
        %v293 = vadd.f32 %v290, 1.0
        %v294 = vadd.f32 %v292, 1.0
        %v295 = vrcp.pop %v293
        %v296 = vmul.f32 1.0, %v295
        %v297 = vrcp.pop %v294
        %v298 = vmul.f32 1.0, %v297
        %300 = vset.pattern.permute.xlu0 0
        %301 = vperm.xlu0 %300, %v296
        %v302 = vpop.permute.xlu0 %301
        %305 = vset.pattern.permute.xlu0 0
        %306 = vperm.xlu0 %305, %v298
        %v307 = vpop.permute.xlu0 %306
        %v309 = vmul.f32 %v204, %v302
        %v310 = vmul.f32 %v205, %v302
        %v311 = vmul.f32 %v206, %v307
        %v312 = vmul.f32 %v207, %v307
        %313 = vst [vmem:[%s203] sm:$0xff] %v309
        %314 = vst [vmem:[%s203 + $0x8] sm:$0xff] %v310
        %315 = vst [vmem:[%s203 + $0x10] sm:$0xff] %v311
        %316 = vst [vmem:[%s203 + $0x18] sm:$0xff] %v312
        %s317 = sand.u32 %s98, 1
        %s318 = scalar_lea.sflag [#allocation7], %s317
        %s319 = sand.u32 %s98, 1
        %s320 = smul.addr %s319, 32
        %s321 = scalar_lea.vmem [#allocation10], %s320
        // Predicated region
        $region41: #{tpu_custom_call.1} parent=31 // pred_check
          %p322 = pneg %p108
        $region42: #{tpu_custom_call.1} parent=31 // pred_check_branch
          %324 = sbr.rel (%p322) target = $region44
        $region43: #{tpu_custom_call.1} parent=31 // pred_region
          %s326 = ssub.s32 512, 512
          %327 = vsyncadd %s318, %s326
          %s328 = smul.addr %s22, 4
          %s329 = smul.addr %s328, 128
          %s330 = scalar_lea.hbm %s3, %s329
          %s331 = sshll.u32 %s321, 4
          %s332 = int_to_ptr.vmem [resolvable:$true] %s331
          %337 = dma.vmem_to_hbm [thread:$0]  %s332, 512, %s330, %s318, 256, 256, 16
        $region44: #{tpu_custom_call.1} parent=31 // pred_fallthru
          _
      $region32: #{tpu_custom_call.1} parent=5 // pred_fallthru
        _
      %p338 = scmp.le.s32.totalorder 2, %s17
      // Predicated region
      $region45: #{tpu_custom_call.1} parent=5 // pred_check
        %p339 = pneg %p338
      $region46: #{tpu_custom_call.1} parent=5 // pred_check_branch
        %341 = sbr.rel (%p339) target = $region48
      $region47: #{tpu_custom_call.1} parent=5 // pred_region
        %s342 = ssub.s32 %s17, 2
        // Predicated region
        $region49: #{tpu_custom_call.1} parent=47 // pred_check
          %p343 = pneg %p114
        $region50: #{tpu_custom_call.1} parent=47 // pred_check_branch
          %345 = sbr.rel (%p343) target = $region52
        $region51: #{tpu_custom_call.1} parent=47 // pred_region
          %s346 = sand.u32 %s99, 1
          %s347 = scalar_lea.sflag [#allocation7], %s346
          %s348 = sand.u32 %s99, 1
          %s349 = smul.addr %s348, 32
          %s350 = scalar_lea.vmem [#allocation10], %s349
          %351 = dma.done %s347, 512
        $region52: #{tpu_custom_call.1} parent=47 // pred_fallthru
          _
      $region48: #{tpu_custom_call.1} parent=5 // pred_fallthru
        _
    $region6: #{tpu_custom_call.1} parent=1 // loop_footer
      %s21 = sadd.s32 1, %s17
    $region7: #{tpu_custom_call.1} parent=1 // loop_footer_branch
      %16 = sbr.rel target = $region3
    $region8: #{tpu_custom_call.1} parent=1 // loop_exit
      _
    %352 = vsyncpa [#allocation6], 1
    %s353 = scalar_lea.sflag [#allocation6], 1
    %354 = vsyncpa %s353, 1
    %355 = vsyncpa [#allocation7], 1
    %s356 = scalar_lea.sflag [#allocation7], 1
    %357 = vsyncpa %s356, 1
    %358 = vsyncpa [#allocation8], 1
    %s359 = scalar_lea.sflag [#allocation8], 1
    %360 = vsyncpa %s359, 1

</llo_original>
